<compile_context>
chip_gen: v5e
topology: v5e:2x2
jax: 0.10.0
libtpu: 0.0.40
codegen_flags: <defaults>
</compile_context>

<pallas_src>
import jax
import jax.numpy as jnp
from jax import lax
from jax.experimental import pallas as pl
from jax.experimental.pallas import tpu as pltpu


def _round_up(v, m):
    return ((v + m - 1) // m) * m


def _cls_score_kernel(x_ref, w_ref, b_ref, out_ref):
    # x_ref: (TN, C)   w_ref: (Kp, C)   b_ref: (1, Kp)   out_ref: (TN, Kp)
    # Contract the C axes directly (weight stays in nn.Linear's (K, C) layout).
    acc = lax.dot_general(
        x_ref[...],
        w_ref[...],
        dimension_numbers=(((1,), (1,)), ((), ())),
        preferred_element_type=jnp.float32,
    )
    out_ref[...] = (acc + b_ref[...]).astype(out_ref.dtype)


def fast_rcnn_class_predictor(x, weight, bias, *, block_n=128, compute_dtype=None):
    """Equivalent of FastRCNNClassPredictor.forward.

    Args:
      x:             (N, C) or (N, C, 1, 1) float array.
      weight:        (num_classes, in_channels) -- like nn.Linear.weight.
      bias:          (num_classes,)             -- like nn.Linear.bias.
      block_n:       max rows per grid step (multiple of 8; 128 default).
      compute_dtype: optional operand dtype for the matmul (e.g. jnp.bfloat16
                     on v6e/v7x); accumulation and bias add stay f32.
    Returns:
      scores: (N, num_classes), dtype of x.
    """
    if x.ndim == 4:
        assert x.shape[2] == 1 and x.shape[3] == 1, "expected spatial dims [1, 1]"
    x2d = x.reshape(x.shape[0], -1)  # flatten(start_dim=1)

    n, c = x2d.shape
    k = weight.shape[0]
    assert weight.shape[1] == c

    out_dtype = x2d.dtype

    # Optional operand cast (bf16 halves HBM bytes on v6e/v7x; f32 accumulate
    # below preserves classification-head numerics).
    if compute_dtype is not None:
        x2d = x2d.astype(compute_dtype)
        weight = weight.astype(compute_dtype)

    # --- Padding for TPU-friendly layout -----------------------------------
    # Lane-dense output: pad K up to a multiple of 128 (padded cols are zero
    # in both weight and bias, sliced off at the end). Only touches the tiny
    # parameters.
    kp = _round_up(max(k, 128), 128)
    w_p = weight if kp == k else jnp.zeros((kp, c), weight.dtype).at[:k, :].set(weight)
    b_p = jnp.zeros((1, kp), jnp.float32).at[0, :k].set(bias.astype(jnp.float32))

    # Rows: only sublane-align (multiple of 8) when strictly necessary; the
    # row-tile grid itself is ragged and Pallas masks the last partial block,
    # so no big pad-to-tile copy of x.
    n8 = _round_up(n, 8)
    x_p = x2d if n8 == n else jnp.zeros((n8, c), x2d.dtype).at[:n, :].set(x2d)

    tn = min(block_n, n8)
    grid = (pl.cdiv(n8, tn),)

    x_itemsize = jnp.dtype(x_p.dtype).itemsize
    w_itemsize = jnp.dtype(w_p.dtype).itemsize
    cost = pl.CostEstimate(
        flops=2 * n8 * c * kp,
        transcendentals=0,
        bytes_accessed=n8 * c * x_itemsize
        + kp * c * w_itemsize
        + kp * 4
        + n8 * kp * jnp.dtype(out_dtype).itemsize,
    )

    out = pl.pallas_call(
        _cls_score_kernel,
        out_shape=jax.ShapeDtypeStruct((n8, kp), out_dtype),
        grid_spec=pl.GridSpec(
            grid=grid,
            in_specs=[
                pl.BlockSpec((tn, c), lambda i: (i, 0)),   # x tile, pipelined over N
                pl.BlockSpec((kp, c), lambda i: (0, 0)),   # weight, VMEM-resident
                pl.BlockSpec((1, kp), lambda i: (0, 0)),   # bias, VMEM-resident
            ],
            out_specs=pl.BlockSpec((tn, kp), lambda i: (i, 0)),
        ),
        compiler_params=pltpu.CompilerParams(
            # N tiles are independent -> shard across v7x's 2 TensorCores
            # (no-op on single-TC v5e/v6e).
            dimension_semantics=("parallel",),
            # Sized for v7x's 64 MiB physical VMEM with headroom; fine on
            # v5e/v6e as well.
            vmem_limit_bytes=32 * 1024 * 1024,
        ),
        cost_estimate=cost,
    )(x_p, w_p, b_p)

    return out[:n, :k]


if __name__ == "__main__":
    key = jax.random.PRNGKey(0)
    k_x, k_w, k_b = jax.random.split(key, 3)

    batch = 8
    in_channels = 32
    num_classes = 4

    # Input shaped like a pooled RoI feature map: (N, C, 1, 1), NCHW.
    x = jax.random.normal(k_x, (batch, in_channels, 1, 1), dtype=jnp.float32)

    # Deterministic parameter init (synthetic, not loaded from a checkpoint).
    weight = jax.random.normal(k_w, (num_classes, in_channels),
                               dtype=jnp.float32) * 0.05
    bias = jax.random.normal(k_b, (num_classes,), dtype=jnp.float32) * 0.05

    scores = fast_rcnn_class_predictor(x, weight, bias)
    scores = jax.block_until_ready(scores)

    # Reference check in plain JAX.
    ref = x.reshape(batch, -1) @ weight.T + bias
    assert scores.shape == (batch, num_classes)
    assert jnp.allclose(scores, ref, atol=1e-5, rtol=1e-5)

    print("KERNEL_OK")
</pallas_src>

<mosaic_0001>
module attributes {stable_mosaic.version = 11 : i64} {
  func.func @_cls_score_kernel(%arg0: i32, %arg1: memref<8x32xf32, #tpu.memory_space<vmem>>, %arg2: memref<128x32xf32, #tpu.memory_space<vmem>>, %arg3: memref<1x128xf32, #tpu.memory_space<vmem>>, %arg4: memref<8x128xf32, #tpu.memory_space<vmem>>) attributes {dimension_semantics = [#tpu.dimension_semantics<parallel>], iteration_bounds = array<i64: 1>, scalar_prefetch = 0 : i64, scratch_operands = 0 : i64, tpu.core_type = #tpu.core_type<tc>, window_params = [{transform_indices = @transform_0, window_bounds = array<i64: 8, 32>}, {pipeline_mode = #tpu.pipeline_mode<synchronous>, transform_indices = @transform_1, window_bounds = array<i64: 128, 32>}, {pipeline_mode = #tpu.pipeline_mode<synchronous>, transform_indices = @transform_2, window_bounds = array<i64: 1, 128>}, {transform_indices = @transform_3, window_bounds = array<i64: 8, 128>}]} {
    %c0 = arith.constant 0 : index
    %c0_0 = arith.constant 0 : index
    %0 = vector.load %arg1[%c0, %c0_0] : memref<8x32xf32, #tpu.memory_space<vmem>>, vector<8x32xf32>
    %c0_1 = arith.constant 0 : index
    %c0_2 = arith.constant 0 : index
    %1 = vector.load %arg2[%c0_1, %c0_2] : memref<128x32xf32, #tpu.memory_space<vmem>>, vector<128x32xf32>
    %cst = arith.constant dense<0.000000e+00> : vector<8x128xf32>
    %2 = tpu.matmul %0, %1, %cst {dimension_numbers = #tpu.dot_dimension_numbers<[1], [1], [0], [0], [0, 0, 1, 0], [], []>} : vector<8x32xf32>, vector<128x32xf32>, vector<8x128xf32> -> vector<8x128xf32>
    %c0_3 = arith.constant 0 : index
    %c0_4 = arith.constant 0 : index
    %3 = vector.load %arg3[%c0_3, %c0_4] : memref<1x128xf32, #tpu.memory_space<vmem>>, vector<1x128xf32>
    %4 = vector.broadcast %3 : vector<1x128xf32> to vector<8x128xf32>
    %5 = arith.addf %2, %4 : vector<8x128xf32>
    %c0_5 = arith.constant 0 : index
    %c0_6 = arith.constant 0 : index
    %6 = vector.load %arg4[%c0_5, %c0_6] : memref<8x128xf32, #tpu.memory_space<vmem>>, vector<8x128xf32>
    tpu.vector_store %arg4[%c0_5, %c0_6], %5 {strides = array<i32>} : memref<8x128xf32, #tpu.memory_space<vmem>>, vector<8x128xf32>,
    return
  }
  func.func @transform_0(%arg0: i32) -> (i32, i32) {
    %c0_i32 = arith.constant 0 : i32
    %c0_i32_0 = arith.constant 0 : i32
    return %arg0, %c0_i32 : i32, i32
  }
  func.func @transform_1(%arg0: i32) -> (i32, i32) {
    %c0_i32 = arith.constant 0 : i32
    %c0_i32_0 = arith.constant 0 : i32
    %c0_i32_1 = arith.constant 0 : i32
    return %c0_i32, %c0_i32_0 : i32, i32
  }
  func.func @transform_2(%arg0: i32) -> (i32, i32) {
    %c0_i32 = arith.constant 0 : i32
    %c0_i32_0 = arith.constant 0 : i32
    %c0_i32_1 = arith.constant 0 : i32
    return %c0_i32, %c0_i32_0 : i32, i32
  }
  func.func @transform_3(%arg0: i32) -> (i32, i32) {
    %c0_i32 = arith.constant 0 : i32
    %c0_i32_0 = arith.constant 0 : i32
    return %arg0, %c0_i32 : i32, i32
  }
}

</mosaic_0001>

<llo_original>
// kernel: tpu_custom_call.1
$region0: #{tpu_custom_call.1}
  #allocation0 [shape = 'u32[]', space=smem, size = 0x4, offset = 0x4, fixed_abs, tag = 'smem constant byte address 0x4 - core index']
  #allocation1 [shape = 'u32[72,128]{1,0:T(1,128)}', space=vmem, size = 0x9000, scoped, tag = 'internal scratch']
  %s0 = inlined_call_operand.vmem [shape: f32[8,32], index: 0, kind: input, shape index: {}]
  %s1 = inlined_call_operand.vmem [shape: f32[128,32], index: 1, kind: input, shape index: {}]
  %s2 = inlined_call_operand.vmem [shape: f32[1,128], index: 2, kind: input, shape index: {}]
  %s3 = inlined_call_operand.hbm [shape: f32[8,128], index: 3, kind: output, shape index: {}]
  %s4 = sld [smem:[#allocation0]]
  $region22: #{tpu_custom_call.1} parent=0
    _
  %s6 = ssub.s32 1, %s4
  %s7 = scalar_select 0, %s6, %s4
  $region1: #{tpu_custom_call.1} parent=0
    #allocation2 [shape = 'u8[4096]{0}', space=vmem, size = 0x1000, scoped, tag = 'output window, operand 0, single buffered']
    #allocation3 [shape = 's32[1]{0}', space=sflag, size = 0x4, scoped, tag = 'scoped memory for tpu_custom_call.1']
    %8 = vsyncpa [#allocation3], 0
    // Predicated region
    $region2: #{tpu_custom_call.1} parent=1 // pred_check
      _
    $region3: #{tpu_custom_call.1} parent=1 // pred_check_branch
      %10 = sbr.rel (0) target = $region5
    $region4: #{tpu_custom_call.1} parent=1 // pred_region
      _
    $region5: #{tpu_custom_call.1} parent=1 // pred_fallthru
      _
    // Predicated region
    $region6: #{tpu_custom_call.1} parent=1 // pred_check
      _
    $region7: #{tpu_custom_call.1} parent=1 // pred_check_branch
      %12 = sbr.rel (0) target = $region9
    $region8: #{tpu_custom_call.1} parent=1 // pred_region
      _
    $region9: #{tpu_custom_call.1} parent=1 // pred_fallthru
      _
    // Predicated region
    $region10: #{tpu_custom_call.1} parent=1 // pred_check
      _
    $region11: #{tpu_custom_call.1} parent=1 // pred_check_branch
      %14 = sbr.rel (0) target = $region13
    $region12: #{tpu_custom_call.1} parent=1 // pred_region
      _
    $region13: #{tpu_custom_call.1} parent=1 // pred_fallthru
      _
    %v15 = vld [vmem:[%s0] sm:$0xff]
    %v16 = vld [vmem:[%s1] sm:$0xff]
    %v17 = vld [vmem:[%s1 + $0x8] sm:$0xff]
    %v18 = vld [vmem:[%s1 + $0x10] sm:$0xff]
    %v19 = vld [vmem:[%s1 + $0x18] sm:$0xff]
    %v20 = vld [vmem:[%s1 + $0x20] sm:$0xff]
    %v21 = vld [vmem:[%s1 + $0x28] sm:$0xff]
    %v22 = vld [vmem:[%s1 + $0x30] sm:$0xff]
    %v23 = vld [vmem:[%s1 + $0x38] sm:$0xff]
    %v24 = vld [vmem:[%s1 + $0x40] sm:$0xff]
    %v25 = vld [vmem:[%s1 + $0x48] sm:$0xff]
    %v26 = vld [vmem:[%s1 + $0x50] sm:$0xff]
    %v27 = vld [vmem:[%s1 + $0x58] sm:$0xff]
    %v28 = vld [vmem:[%s1 + $0x60] sm:$0xff]
    %v29 = vld [vmem:[%s1 + $0x68] sm:$0xff]
    %v30 = vld [vmem:[%s1 + $0x70] sm:$0xff]
    %v31 = vld [vmem:[%s1 + $0x78] sm:$0xff]
    %v32 = vld [vmem:[%s2] sm:$0x1]
    %v34 = vperm.slane %v32, 0
    %vm36 = vcmask 261120
    %v38 = vsel %vm36, %v15, 0
    %v41 = vsel %vm36, %v16, 0
    %v44 = vsel %vm36, %v17, 0
    %v47 = vsel %vm36, %v18, 0
    %v50 = vsel %vm36, %v19, 0
    %v53 = vsel %vm36, %v20, 0
    %v56 = vsel %vm36, %v21, 0
    %v59 = vsel %vm36, %v22, 0
    %v62 = vsel %vm36, %v23, 0
    %v65 = vsel %vm36, %v24, 0
    %v68 = vsel %vm36, %v25, 0
    %v71 = vsel %vm36, %v26, 0
    %v74 = vsel %vm36, %v27, 0
    %v77 = vsel %vm36, %v28, 0
    %v80 = vsel %vm36, %v29, 0
    %v83 = vsel %vm36, %v30, 0
    %v86 = vsel %vm36, %v31, 0
    %88 = vmatpush.xpose.msra.mxu0 %v86
    %89 = vmatpush.xpose.msra.mxu0 %v83
    %90 = vmatpush.xpose.msra.mxu0 %v80
    %91 = vmatpush.xpose.msra.mxu0 %v77
    %92 = vmatpush.xpose.msra.mxu0 %v74
    %93 = vmatpush.xpose.msra.mxu0 %v71
    %94 = vmatpush.xpose.msra.mxu0 %v68
    %95 = vmatpush.xpose.msra.mxu0 %v65
    %96 = vmatpush.xpose.msra.mxu0 %v62
    %97 = vmatpush.xpose.msra.mxu0 %v59
    %98 = vmatpush.xpose.msra.mxu0 %v56
    %99 = vmatpush.xpose.msra.mxu0 %v53
    %100 = vmatpush.xpose.msra.mxu0 %v50
    %101 = vmatpush.xpose.msra.mxu0 %v47
    %102 = vmatpush.xpose.msra.mxu0 %v44
    %103 = vmatpush.xpose.msra.mxu0 %v41
    %104 = vmatmul.f32.gmra.mxu0 %v38
    %v105 = vpop.f32.mrf.mxu0
    %v106 = vadd.f32 %v34, %v105
    %107 = vdwg.mxu0
    %108 = vst [vmem:[#allocation2] sm:$0xff] %v106
    // Predicated region
    $region14: #{tpu_custom_call.1} parent=1 // pred_check
      _
    $region15: #{tpu_custom_call.1} parent=1 // pred_check_branch
      %110 = sbr.rel (0) target = $region17
    $region16: #{tpu_custom_call.1} parent=1 // pred_region
      %112 = vsyncadd [#allocation3], 0
      %s114 = sshll.u32 [#allocation2], 4
      %s115 = int_to_ptr.vmem [resolvable:$true] %s114
      %s116 = sshll.u32 %s3, 4
      %s117 = int_to_ptr.hbm [resolvable:$true] %s116
      %119 = dma.vmem_to_hbm [thread:$0]  %s115, 128, %s117, [#allocation3]
    $region17: #{tpu_custom_call.1} parent=1 // pred_fallthru
      _
    // Predicated region
    $region18: #{tpu_custom_call.1} parent=1 // pred_check
      _
    $region19: #{tpu_custom_call.1} parent=1 // pred_check_branch
      %121 = sbr.rel (0) target = $region21
    $region20: #{tpu_custom_call.1} parent=1 // pred_region
      %123 = dma.done [#allocation3], 128
    $region21: #{tpu_custom_call.1} parent=1 // pred_fallthru
      _
    %124 = vsyncpa [#allocation3], 1

</llo_original>
